<compile_context>
chip_gen: v6e
topology: v6e:2x2x1
jax: 0.10.0
libtpu: 0.0.40
codegen_flags: <defaults>
</compile_context>

<pallas_src>
import functools

import jax
import jax.numpy as jnp
from jax.experimental import pallas as pl
from jax.experimental.pallas import tpu as pltpu


def _round_up(x, m):
    return ((x + m - 1) // m) * m


def mlp_kernel(xT_ref, w1_ref, b1_ref, w2_ref, b2_ref, w3_ref, b3_ref, o_ref, *, chunk):
    """Batch-on-lanes fused MLP.

    xT_ref : (d_in, TILE_B) compute dtype  -- batch on the lane axis
    w1_ref : (h1, d_in),  b1_ref: (h1, 1)
    w2_ref : (h2, h1),    b2_ref: (h2, 1)
    w3_ref : (h2, 1),     b3_ref: (1, 1)
    o_ref  : (1, TILE_B) f32               -- lane-dense output row
    """
    n_chunks = xT_ref.shape[1] // chunk

    def body(c):
        col = pl.multiple_of(c * chunk, chunk)
        x_c = xT_ref[:, pl.ds(col, chunk)]                        # (d_in, chunk)
        # Layer 1: W1 @ x (MXU, f32 accumulation) + bias + ReLU
        h = jnp.dot(w1_ref[...], x_c, preferred_element_type=jnp.float32)
        h = jnp.maximum(h + b1_ref[...], 0.0)                     # (h1, chunk) f32
        # Layer 2: W2 @ h (MXU) + bias + ReLU
        h = jnp.dot(w2_ref[...], h.astype(w2_ref.dtype),
                    preferred_element_type=jnp.float32)
        h = jnp.maximum(h + b2_ref[...], 0.0)                     # (h2, chunk) f32
        # Output layer (out_features = 1): VPU multiply + sublane reduce (XLU slack),
        # producing a lane-dense (1, chunk) row instead of a 1-column MXU pass.
        out = jnp.sum(h * w3_ref[...], axis=0, keepdims=True) + b3_ref[...]
        o_ref[:, pl.ds(col, chunk)] = out.astype(o_ref.dtype)

    if n_chunks == 1:
        body(0)
    else:
        @pl.loop(0, n_chunks)
        def _(c):
            body(c)


@functools.partial(jax.jit, static_argnames=("tile_b", "use_bf16"))
def mlp_forward(x, params, *, tile_b=2048, use_bf16=True):
    """x: (B, d_in) f32. params: w1 (h1,d_in), b1 (h1,1), w2 (h2,h1), b2 (h2,1),
    w3 (1,h2) [PyTorch layout], b3 (1,1). Returns (B, 1) f32."""
    w1, b1, w2, b2, w3, b3 = (params["w1"], params["b1"], params["w2"],
                              params["b2"], params["w3"], params["b3"])
    B, d_in = x.shape
    h1, h2 = w1.shape[0], w2.shape[0]
    assert w1.shape == (h1, d_in) and w2.shape == (h2, h1)

    # Normalize small-parameter layouts for the transposed (batch-on-lanes) kernel.
    b1c = b1.reshape(h1, 1)
    b2c = b2.reshape(h2, 1)
    w3c = w3.reshape(h2, 1)            # column for the VPU multiply + sublane reduce
    b3c = b3.reshape(1, 1)

    compute_dtype = jnp.bfloat16 if use_bf16 else jnp.float32

    # ---- Batch tile selection ------------------------------------------------
    # Big tiles amortize per-grid-step overhead and make the x DMA bandwidth-
    # efficient, but cap so n_tiles >= 2 whenever possible (both v7x TCs busy).
    cap = _round_up(max(pl.cdiv(B, 2), 1), 128)
    tile_b = max(128, min(_round_up(tile_b, 128), cap))
    bp = _round_up(B, tile_b)
    n_tiles = bp // tile_b

    # Inner sub-chunk (bounds vreg/VMEM pressure of f32 intermediates at big tiles).
    chunk = next(c for c in (512, 256, 128) if tile_b % c == 0)

    # Batch on the lane axis: present x as (d_in, bp) and stream column blocks.
    x_t = x.astype(compute_dtype).T                               # (d_in, B)
    if bp != B:
        x_t = jnp.pad(x_t, ((0, 0), (0, bp - B)))

    w1_c = w1.astype(compute_dtype)
    w2_c = w2.astype(compute_dtype)
    # w3 / biases stay f32 (tiny; they feed f32 accumulators / the VPU path).

    itemsize = jnp.dtype(compute_dtype).itemsize
    weight_bytes = (h1 * d_in + h2 * h1) * itemsize + (h1 + 2 * h2 + 1) * 4
    working_set = (2 * d_in * tile_b * itemsize       # double-buffered x^T tile
                   + 2 * tile_b * 4                   # double-buffered output row
                   + 2 * weight_bytes                 # resident weights (headroom)
                   + 2 * (h1 + h2) * chunk * 4)       # f32 intermediates per chunk
    vmem_limit = int(min(max(4 * working_set, 8 << 20), 64 << 20))

    cost = pl.CostEstimate(
        flops=2 * bp * (d_in * h1 + h1 * h2 + h2),
        transcendentals=0,
        bytes_accessed=bp * d_in * itemsize + bp * 4 + weight_bytes,
    )

    const = lambda shape: pl.BlockSpec(shape, lambda i: (0, 0))   # resident across grid

    out_row = pl.pallas_call(
        functools.partial(mlp_kernel, chunk=chunk),
        out_shape=jax.ShapeDtypeStruct((1, bp), jnp.float32),
        grid=(n_tiles,),
        in_specs=[
            pl.BlockSpec((d_in, tile_b), lambda i: (0, i)),       # x^T, streamed
            const((h1, d_in)),                                    # w1
            const((h1, 1)),                                       # b1
            const((h2, h1)),                                      # w2
            const((h2, 1)),                                       # b2
            const((h2, 1)),                                       # w3 (column)
            const((1, 1)),                                        # b3
        ],
        out_specs=pl.BlockSpec((1, tile_b), lambda i: (0, i)),    # lane-dense output
        compiler_params=pltpu.CompilerParams(
            dimension_semantics=("parallel",),
            vmem_limit_bytes=vmem_limit,
        ),
        cost_estimate=cost,
    )(x_t, w1_c, b1c, w2_c, b2c, w3c, b3c)

    return out_row[0, :B].reshape(B, 1)


def init_params(key, input_dim, hidden_dims):
    """PyTorch nn.Linear-style init (uniform +-1/sqrt(fan_in)), PyTorch layouts:
    weight (out, in); bias stored as an (out, 1) column. Output layer -> 1."""
    params = {}
    dims = [input_dim] + list(hidden_dims) + [1]
    keys = jax.random.split(key, len(dims) - 1)
    for i, (d_i, d_o) in enumerate(zip(dims[:-1], dims[1:]), start=1):
        kw, kb = jax.random.split(keys[i - 1])
        scale = 1.0 / jnp.sqrt(d_i)
        params[f"w{i}"] = jax.random.uniform(kw, (d_o, d_i), jnp.float32, -scale, scale)
        params[f"b{i}"] = jax.random.uniform(kb, (d_o, 1), jnp.float32, -scale, scale)
    return params


def mlp_reference(x, params, use_bf16=True):
    """Pure-JAX reference with the same cast/accumulation semantics as the kernel."""
    cdt = jnp.bfloat16 if use_bf16 else jnp.float32
    w1, b1 = params["w1"], params["b1"].reshape(1, -1)
    w2, b2 = params["w2"], params["b2"].reshape(1, -1)
    w3, b3 = params["w3"].reshape(-1, 1), params["b3"].reshape(1, 1)
    h = jnp.dot(x.astype(cdt), w1.T.astype(cdt), preferred_element_type=jnp.float32) + b1
    h = jnp.maximum(h, 0.0)
    h = jnp.dot(h.astype(cdt), w2.T.astype(cdt), preferred_element_type=jnp.float32) + b2
    h = jnp.maximum(h, 0.0)
    return jnp.dot(h, w3) + b3


if __name__ == "__main__":
    input_dim = 32
    hidden_dims = [64, 32]

    key = jax.random.PRNGKey(0)
    k_p, k1, k2, k3 = jax.random.split(key, 4)
    params = init_params(k_p, input_dim, hidden_dims)

    # batch=8: padding + single tile; batch=2500: two tiles (both v7x TCs) and the
    # in-kernel chunk loop. Also check the pure-f32 path once.
    for batch, k, use_bf16 in ((8, k1, True), (8, k2, False), (2500, k3, True)):
        x = jax.random.normal(k, (batch, input_dim), jnp.float32)
        out = jax.block_until_ready(mlp_forward(x, params, use_bf16=use_bf16))
        ref = mlp_reference(x, params, use_bf16=use_bf16)
        assert out.shape == (batch, 1), out.shape
        assert jnp.allclose(out, ref, atol=2e-4, rtol=2e-4), \
            f"mismatch vs reference (batch={batch}, bf16={use_bf16})"

    print("KERNEL_OK")
</pallas_src>

<mosaic_0001>
module attributes {stable_mosaic.version = 11 : i64} {
  func.func @mlp_kernel(%arg0: i32, %arg1: memref<32x128xbf16, #tpu.memory_space<vmem>>, %arg2: memref<64x32xbf16, #tpu.memory_space<vmem>>, %arg3: memref<64x1xf32, #tpu.memory_space<vmem>>, %arg4: memref<32x64xbf16, #tpu.memory_space<vmem>>, %arg5: memref<32x1xf32, #tpu.memory_space<vmem>>, %arg6: memref<32x1xf32, #tpu.memory_space<vmem>>, %arg7: memref<1x1xf32, #tpu.memory_space<vmem>>, %arg8: memref<1x128xf32, #tpu.memory_space<vmem>>) attributes {dimension_semantics = [#tpu.dimension_semantics<parallel>], iteration_bounds = array<i64: 1>, scalar_prefetch = 0 : i64, scratch_operands = 0 : i64, tpu.core_type = #tpu.core_type<tc>, window_params = [{transform_indices = @transform_0, window_bounds = array<i64: 32, 128>}, {pipeline_mode = #tpu.pipeline_mode<synchronous>, transform_indices = @transform_1, window_bounds = array<i64: 64, 32>}, {pipeline_mode = #tpu.pipeline_mode<synchronous>, transform_indices = @transform_2, window_bounds = array<i64: 64, 1>}, {pipeline_mode = #tpu.pipeline_mode<synchronous>, transform_indices = @transform_3, window_bounds = array<i64: 32, 64>}, {pipeline_mode = #tpu.pipeline_mode<synchronous>, transform_indices = @transform_4, window_bounds = array<i64: 32, 1>}, {pipeline_mode = #tpu.pipeline_mode<synchronous>, transform_indices = @transform_5, window_bounds = array<i64: 32, 1>}, {pipeline_mode = #tpu.pipeline_mode<synchronous>, transform_indices = @transform_6, window_bounds = array<i64: 1, 1>}, {transform_indices = @transform_7, window_bounds = array<i64: 1, 128>}]} {
    %c0_i32 = arith.constant 0 : i32
    %0 = tpu.assume_multiple %c0_i32, 128 : i32
    %c0 = arith.constant 0 : index
    %1 = arith.index_cast %0 : i32 to index
    %2 = vector.load %arg1[%c0, %1] : memref<32x128xbf16, #tpu.memory_space<vmem>>, vector<32x128xbf16>
    %c0_0 = arith.constant 0 : index
    %c0_1 = arith.constant 0 : index
    %3 = vector.load %arg2[%c0_0, %c0_1] : memref<64x32xbf16, #tpu.memory_space<vmem>>, vector<64x32xbf16>
    %cst = arith.constant dense<0.000000e+00> : vector<64x128xf32>
    %4 = tpu.matmul %3, %2, %cst {dimension_numbers = #tpu.dot_dimension_numbers<[1], [0], [0], [1], [0, 0, 1, 1], [], []>} : vector<64x32xbf16>, vector<32x128xbf16>, vector<64x128xf32> -> vector<64x128xf32>
    %c0_2 = arith.constant 0 : index
    %c0_3 = arith.constant 0 : index
    %5 = vector.load %arg3[%c0_2, %c0_3] : memref<64x1xf32, #tpu.memory_space<vmem>>, vector<64x1xf32>
    %6 = vector.broadcast %5 : vector<64x1xf32> to vector<64x128xf32>
    %7 = arith.addf %4, %6 : vector<64x128xf32>
    %cst_4 = arith.constant 0.000000e+00 : f32
    %8 = vector.broadcast %cst_4 : f32 to vector<64x128xf32>
    %9 = arith.maximumf %7, %8 : vector<64x128xf32>
    %c0_5 = arith.constant 0 : index
    %c0_6 = arith.constant 0 : index
    %10 = vector.load %arg4[%c0_5, %c0_6] : memref<32x64xbf16, #tpu.memory_space<vmem>>, vector<32x64xbf16>
    %11 = arith.truncf %9 : vector<64x128xf32> to vector<64x128xbf16>
    %cst_7 = arith.constant dense<0.000000e+00> : vector<32x128xf32>
    %12 = tpu.matmul %10, %11, %cst_7 {dimension_numbers = #tpu.dot_dimension_numbers<[1], [0], [0], [1], [0, 0, 1, 1], [], []>} : vector<32x64xbf16>, vector<64x128xbf16>, vector<32x128xf32> -> vector<32x128xf32>
    %c0_8 = arith.constant 0 : index
    %c0_9 = arith.constant 0 : index
    %13 = vector.load %arg5[%c0_8, %c0_9] : memref<32x1xf32, #tpu.memory_space<vmem>>, vector<32x1xf32>
    %14 = vector.broadcast %13 : vector<32x1xf32> to vector<32x128xf32>
    %15 = arith.addf %12, %14 : vector<32x128xf32>
    %cst_10 = arith.constant 0.000000e+00 : f32
    %16 = vector.broadcast %cst_10 : f32 to vector<32x128xf32>
    %17 = arith.maximumf %15, %16 : vector<32x128xf32>
    %c0_11 = arith.constant 0 : index
    %c0_12 = arith.constant 0 : index
    %18 = vector.load %arg6[%c0_11, %c0_12] : memref<32x1xf32, #tpu.memory_space<vmem>>, vector<32x1xf32>
    %19 = vector.broadcast %18 : vector<32x1xf32> to vector<32x128xf32>
    %20 = arith.mulf %17, %19 : vector<32x128xf32>
    %cst_13 = arith.constant dense<0.000000e+00> : vector<128xf32>
    %21 = vector.multi_reduction <add>, %20, %cst_13 [0] : vector<32x128xf32> to vector<128xf32>
    %22 = vector.shape_cast %21 : vector<128xf32> to vector<1x128xf32>
    %c0_14 = arith.constant 0 : index
    %c0_15 = arith.constant 0 : index
    %23 = vector.load %arg7[%c0_14, %c0_15] : memref<1x1xf32, #tpu.memory_space<vmem>>, vector<1x1xf32>
    %24 = vector.broadcast %23 : vector<1x1xf32> to vector<1x128xf32>
    %25 = arith.addf %22, %24 : vector<1x128xf32>
    %c0_16 = arith.constant 0 : index
    %26 = arith.index_cast %0 : i32 to index
    %27 = vector.load %arg8[%c0_16, %26] : memref<1x128xf32, #tpu.memory_space<vmem>>, vector<1x128xf32>
    tpu.vector_store %arg8[%c0_16, %26], %25 {strides = array<i32>} : memref<1x128xf32, #tpu.memory_space<vmem>>, vector<1x128xf32>,
    return
  }
  func.func @transform_0(%arg0: i32) -> (i32, i32) {
    %c0_i32 = arith.constant 0 : i32
    %c0_i32_0 = arith.constant 0 : i32
    return %c0_i32, %arg0 : i32, i32
  }
  func.func @transform_1(%arg0: i32) -> (i32, i32) {
    %c0_i32 = arith.constant 0 : i32
    %c0_i32_0 = arith.constant 0 : i32
    %c0_i32_1 = arith.constant 0 : i32
    return %c0_i32, %c0_i32_0 : i32, i32
  }
  func.func @transform_2(%arg0: i32) -> (i32, i32) {
    %c0_i32 = arith.constant 0 : i32
    %c0_i32_0 = arith.constant 0 : i32
    %c0_i32_1 = arith.constant 0 : i32
    return %c0_i32, %c0_i32_0 : i32, i32
  }
  func.func @transform_3(%arg0: i32) -> (i32, i32) {
    %c0_i32 = arith.constant 0 : i32
    %c0_i32_0 = arith.constant 0 : i32
    %c0_i32_1 = arith.constant 0 : i32
    return %c0_i32, %c0_i32_0 : i32, i32
  }
  func.func @transform_4(%arg0: i32) -> (i32, i32) {
    %c0_i32 = arith.constant 0 : i32
    %c0_i32_0 = arith.constant 0 : i32
    %c0_i32_1 = arith.constant 0 : i32
    return %c0_i32, %c0_i32_0 : i32, i32
  }
  func.func @transform_5(%arg0: i32) -> (i32, i32) {
    %c0_i32 = arith.constant 0 : i32
    %c0_i32_0 = arith.constant 0 : i32
    %c0_i32_1 = arith.constant 0 : i32
    return %c0_i32, %c0_i32_0 : i32, i32
  }
  func.func @transform_6(%arg0: i32) -> (i32, i32) {
    %c0_i32 = arith.constant 0 : i32
    %c0_i32_0 = arith.constant 0 : i32
    %c0_i32_1 = arith.constant 0 : i32
    return %c0_i32, %c0_i32_0 : i32, i32
  }
  func.func @transform_7(%arg0: i32) -> (i32, i32) {
    %c0_i32 = arith.constant 0 : i32
    %c0_i32_0 = arith.constant 0 : i32
    return %c0_i32, %arg0 : i32, i32
  }
}

</mosaic_0001>

<llo_original>
// kernel: mlp_forward.1
$region0: #{mlp_forward.1}
  #allocation0 [shape = 'u32[]', space=smem, size = 0x4, offset = 0x4, fixed_abs, tag = 'smem constant byte address 0x4 - core index']
  #allocation1 [shape = 'u32[144,128]{1,0:T(1,128)}', space=vmem, size = 0x12000, scoped, tag = 'internal scratch']
  #allocation2 [shape = 'f32[1,1]{1,0:T(1,128)S(1)}', space=vmem, size = 0x200, scoped, tag = 'scoped memory for mlp_forward.1']
  %s0 = inlined_call_operand.vmem [shape: bf16[32,128], index: 0, kind: input, shape index: {}]
  %s1 = inlined_call_operand.vmem [shape: bf16[64,32], index: 1, kind: input, shape index: {}]
  %s2 = inlined_call_operand.vmem [shape: f32[64,1], index: 2, kind: input, shape index: {}]
  %s3 = inlined_call_operand.vmem [shape: bf16[32,64], index: 3, kind: input, shape index: {}]
  %s4 = inlined_call_operand.vmem [shape: f32[32,1], index: 4, kind: input, shape index: {}]
  %s5 = inlined_call_operand.vmem [shape: f32[32,1], index: 5, kind: input, shape index: {}]
  %s6 = inlined_call_operand.<no memory space> [shape: f32[1,1], index: 6, kind: input, shape index: {}]
  %s7 = inlined_call_operand.vmem [shape: f32[1,128], index: 7, kind: output, shape index: {}]
  %s8 = sld [smem:[#allocation0]]
  $region38: #{mlp_forward.1} parent=0
    _
  %s10 = ssub.s32 1, %s8
  %s11 = scalar_select 0, %s10, %s8
  %v12 = vstv %s6
  %13 = vst [vmem:[#allocation2] sm:$0x1] %v12
  // Predicated region
  $region2: #{mlp_forward.1} parent=0 // pred_check
    _
  $region3: #{mlp_forward.1} parent=0 // pred_check_branch
    %15 = sbr.rel (0) target = $region5
  $region4: #{mlp_forward.1} parent=0 // pred_region
    _
  $region5: #{mlp_forward.1} parent=0 // pred_fallthru
    _
  // Predicated region
  $region6: #{mlp_forward.1} parent=0 // pred_check
    _
  $region7: #{mlp_forward.1} parent=0 // pred_check_branch
    %17 = sbr.rel (0) target = $region9
  $region8: #{mlp_forward.1} parent=0 // pred_region
    _
  $region9: #{mlp_forward.1} parent=0 // pred_fallthru
    _
  // Predicated region
  $region10: #{mlp_forward.1} parent=0 // pred_check
    _
  $region11: #{mlp_forward.1} parent=0 // pred_check_branch
    %19 = sbr.rel (0) target = $region13
  $region12: #{mlp_forward.1} parent=0 // pred_region
    _
  $region13: #{mlp_forward.1} parent=0 // pred_fallthru
    _
  // Predicated region
  $region14: #{mlp_forward.1} parent=0 // pred_check
    _
  $region15: #{mlp_forward.1} parent=0 // pred_check_branch
    %21 = sbr.rel (0) target = $region17
  $region16: #{mlp_forward.1} parent=0 // pred_region
    _
  $region17: #{mlp_forward.1} parent=0 // pred_fallthru
    _
  // Predicated region
  $region18: #{mlp_forward.1} parent=0 // pred_check
    _
  $region19: #{mlp_forward.1} parent=0 // pred_check_branch
    %23 = sbr.rel (0) target = $region21
  $region20: #{mlp_forward.1} parent=0 // pred_region
    _
  $region21: #{mlp_forward.1} parent=0 // pred_fallthru
    _
  // Predicated region
  $region22: #{mlp_forward.1} parent=0 // pred_check
    _
  $region23: #{mlp_forward.1} parent=0 // pred_check_branch
    %25 = sbr.rel (0) target = $region25
  $region24: #{mlp_forward.1} parent=0 // pred_region
    _
  $region25: #{mlp_forward.1} parent=0 // pred_fallthru
    _
  // Predicated region
  $region26: #{mlp_forward.1} parent=0 // pred_check
    _
  $region27: #{mlp_forward.1} parent=0 // pred_check_branch
    %27 = sbr.rel (0) target = $region29
  $region28: #{mlp_forward.1} parent=0 // pred_region
    _
  $region29: #{mlp_forward.1} parent=0 // pred_fallthru
    _
  %v29 = vld [vmem:[%s0] sm:$0xf]
  %v30 = vld [vmem:[%s0 + $0x4] sm:$0xf]
  %v31 = vld [vmem:[%s0 + $0x8] sm:$0xf]
  %v32 = vld [vmem:[%s0 + $0xc] sm:$0xf]
  %v33 = vld [vmem:[%s1] sm:$0xf]
  %v34 = vld [vmem:[%s1 + $0x4] sm:$0xf]
  %v35 = vld [vmem:[%s1 + $0x8] sm:$0xf]
  %v36 = vld [vmem:[%s1 + $0xc] sm:$0xf]
  %v37 = vld [vmem:[%s1 + $0x10] sm:$0xf]
  %v38 = vld [vmem:[%s1 + $0x14] sm:$0xf]
  %v39 = vld [vmem:[%s1 + $0x18] sm:$0xf]
  %v40 = vld [vmem:[%s1 + $0x1c] sm:$0xf]
  %v41 = vld [vmem:[%s2] sm:$0xff]
  %v42 = vld [vmem:[%s2 + $0x8] sm:$0xff]
  %v43 = vld [vmem:[%s2 + $0x10] sm:$0xff]
  %v44 = vld [vmem:[%s2 + $0x18] sm:$0xff]
  %v45 = vld [vmem:[%s2 + $0x20] sm:$0xff]
  %v46 = vld [vmem:[%s2 + $0x28] sm:$0xff]
  %v47 = vld [vmem:[%s2 + $0x30] sm:$0xff]
  %v48 = vld [vmem:[%s2 + $0x38] sm:$0xff]
  %50 = vset.pattern.permute.xlu0 0
  %51 = vperm.xlu0 %50, %v41
  %v52 = vpop.permute.xlu0 %51
  %55 = vset.pattern.permute.xlu0 0
  %56 = vperm.xlu0 %55, %v42
  %v57 = vpop.permute.xlu0 %56
  %60 = vset.pattern.permute.xlu0 0
  %61 = vperm.xlu0 %60, %v43
  %v62 = vpop.permute.xlu0 %61
  %65 = vset.pattern.permute.xlu0 0
  %66 = vperm.xlu0 %65, %v44
  %v67 = vpop.permute.xlu0 %66
  %70 = vset.pattern.permute.xlu0 0
  %71 = vperm.xlu0 %70, %v45
  %v72 = vpop.permute.xlu0 %71
  %75 = vset.pattern.permute.xlu0 0
  %76 = vperm.xlu0 %75, %v46
  %v77 = vpop.permute.xlu0 %76
  %80 = vset.pattern.permute.xlu0 0
  %81 = vperm.xlu0 %80, %v47
  %v82 = vpop.permute.xlu0 %81
  %85 = vset.pattern.permute.xlu0 0
  %86 = vperm.xlu0 %85, %v48
  %v87 = vpop.permute.xlu0 %86
  %v97 = vunpack.c.l.b16 %v33
  %v98 = vunpack.c.l.b16 %v34
  %v99 = vunpack.c.l.b16 %v35
  %v100 = vunpack.c.l.b16 %v36
  %v101 = vunpack.c.l.b16 %v37
  %v102 = vunpack.c.l.b16 %v38
  %v103 = vunpack.c.l.b16 %v39
  %v104 = vunpack.c.l.b16 %v40
  %v105 = vpack.c.b16 %v98, %v97
  %v106 = vpack.c.b16 %v100, %v99
  %v107 = vpack.c.b16 %v102, %v101
  %v108 = vpack.c.b16 %v104, %v103
  %v113 = vunpack.c.l.b16 %v29
  %v114 = vunpack.c.l.b16 %v30
  %v115 = vunpack.c.l.b16 %v31
  %v116 = vunpack.c.l.b16 %v32
  %v117 = vpack.c.b16 %v114, %v113
  %v118 = vpack.c.b16 %v116, %v115
  %vm121 = vcmask 261120
  %v123 = vsel %vm121, %v105, 0
  %v126 = vsel %vm121, %v106, 0
  %v129 = vsel %vm121, %v107, 0
  %v132 = vsel %vm121, %v108, 0
  %134 = vmatprep.subr.bf16.mxu0 0
  %135 = vmatpush1.bf16.msra.mxu0 0
  %136 = vmatprep.subr.bf16.mxu0 0
  %137 = vmatpush1.bf16.msra.mxu0 0
  %138 = vmatprep.subr.bf16.mxu0 0
  %139 = vmatpush1.bf16.msra.mxu0 0
  %140 = vmatprep.subr.bf16.mxu0 0
  %141 = vmatpush1.bf16.msra.mxu0 0
  %142 = vmatprep.subr.bf16.mxu0 0
  %143 = vmatpush1.bf16.msra.mxu0 0
  %144 = vmatprep.subr.bf16.mxu0 0
  %145 = vmatpush1.bf16.msra.mxu0 0
  %146 = vmatprep.subr.bf16.mxu0 0
  %147 = vmatpush1.bf16.msra.mxu0 %v118
  %148 = vmatprep.subr.bf16.mxu0 0
  %149 = vmatpush1.bf16.msra.mxu0 %v117
  %150 = vmatprep.subr.bf16.mxu0 0
  %151 = vmatpush2.bf16.msra.mxu0 0
  %152 = vmatprep.subr.bf16.mxu0 0
  %153 = vmatpush2.bf16.msra.mxu0 0
  %154 = vmatprep.subr.bf16.mxu0 0
  %155 = vmatpush2.bf16.msra.mxu0 0
  %156 = vmatprep.subr.bf16.mxu0 0
  %157 = vmatpush2.bf16.msra.mxu0 0
  %158 = vmatprep.subr.bf16.mxu0 0
  %159 = vmatpush2.bf16.msra.mxu0 0
  %160 = vmatprep.subr.bf16.mxu0 0
  %161 = vmatpush2.bf16.msra.mxu0 0
  %162 = vmatprep.subr.bf16.mxu0 0
  %163 = vmatpush2.bf16.msra.mxu0 0
  %164 = vmatprep.subr.bf16.mxu0 0
  %165 = vmatpush2.bf16.msra.mxu0 0
  %166 = vmatprep.mubr.bf16.mxu0 0
  %167 = vmatmul.mubr.bf16.gmra.mxu0 %v123
  %v168 = vpop.f32.mrf.mxu0
  %v169 = vadd.f32 %v52, %v168
  %v170 = vpop.f32.mrf.mxu0
  %v171 = vpop.f32.mrf.mxu0
  %v172 = vadd.f32 %v57, %v171
  %v173 = vpop.f32.mrf.mxu0
  %174 = vmatprep.mubr.bf16.mxu0 0
  %175 = vmatmul.mubr.bf16.gmra.mxu0 %v126
  %v176 = vpop.f32.mrf.mxu0
  %v177 = vadd.f32 %v62, %v176
  %v178 = vpop.f32.mrf.mxu0
  %v179 = vpop.f32.mrf.mxu0
  %v180 = vadd.f32 %v67, %v179
  %v181 = vpop.f32.mrf.mxu0
  %182 = vmatprep.mubr.bf16.mxu0 0
  %183 = vmatmul.mubr.bf16.gmra.mxu0 %v129
  %v184 = vpop.f32.mrf.mxu0
  %v185 = vadd.f32 %v72, %v184
  %v186 = vpop.f32.mrf.mxu0
  %v187 = vpop.f32.mrf.mxu0
  %v188 = vadd.f32 %v77, %v187
  %v189 = vpop.f32.mrf.mxu0
  %190 = vmatprep.mubr.bf16.mxu0 0
  %191 = vmatmul.mubr.bf16.gmra.mxu0 %v132
  %v192 = vpop.f32.mrf.mxu0
  %v193 = vadd.f32 %v82, %v192
  %v194 = vpop.f32.mrf.mxu0
  %v195 = vpop.f32.mrf.mxu0
  %v196 = vadd.f32 %v87, %v195
  %v197 = vpop.f32.mrf.mxu0
  %198 = vdwg.mxu0
  %v199 = vmax.f32 %v169, 0.0
  %v200 = vmax.f32 %v172, 0.0
  %v201 = vmax.f32 %v177, 0.0
  %v202 = vmax.f32 %v180, 0.0
  %v203 = vmax.f32 %v185, 0.0
  %v204 = vmax.f32 %v188, 0.0
  %v205 = vmax.f32 %v193, 0.0
  %v206 = vmax.f32 %v196, 0.0
  %v207 = vld [vmem:[%s3] sm:$0xf]
  %v208 = vld [vmem:[%s3 + $0x4] sm:$0xf]
  %v209 = vld [vmem:[%s3 + $0x8] sm:$0xf]
  %v210 = vld [vmem:[%s3 + $0xc] sm:$0xf]
  %v211 = vpack.c.bf16 %v200, %v199
  %v212 = vpack.c.bf16 %v202, %v201
  %v213 = vpack.c.bf16 %v204, %v203
  %v214 = vpack.c.bf16 %v206, %v205
  %v215 = vld [vmem:[%s4] sm:$0xff]
  %v216 = vld [vmem:[%s4 + $0x8] sm:$0xff]
  %v217 = vld [vmem:[%s4 + $0x10] sm:$0xff]
  %v218 = vld [vmem:[%s4 + $0x18] sm:$0xff]
  %220 = vset.pattern.permute.xlu0 0
  %221 = vperm.xlu0 %220, %v215
  %v222 = vpop.permute.xlu0 %221
  %225 = vset.pattern.permute.xlu0 0
  %226 = vperm.xlu0 %225, %v216
  %v227 = vpop.permute.xlu0 %226
  %230 = vset.pattern.permute.xlu0 0
  %231 = vperm.xlu0 %230, %v217
  %v232 = vpop.permute.xlu0 %231
  %235 = vset.pattern.permute.xlu0 0
  %236 = vperm.xlu0 %235, %v218
  %v237 = vpop.permute.xlu0 %236
  %v243 = vunpack.c.l.b16 %v207
  %v244 = vunpack.c.l.b16 %v208
  %v245 = vunpack.c.l.b16 %v209
  %v246 = vunpack.c.l.b16 %v210
  %v247 = vpack.c.b16 %v244, %v243
  %v248 = vpack.c.b16 %v246, %v245
  %vm249 = vcmask 523264
  %v251 = vsel %vm249, %v247, 0
  %v254 = vsel %vm249, %v248, 0
  %256 = vmatprep.subr.bf16.mxu0 0
  %257 = vmatpush1.bf16.msra.mxu0 0
  %258 = vmatprep.subr.bf16.mxu0 0
  %259 = vmatpush1.bf16.msra.mxu0 0
  %260 = vmatprep.subr.bf16.mxu0 0
  %261 = vmatpush1.bf16.msra.mxu0 0
  %262 = vmatprep.subr.bf16.mxu0 0
  %263 = vmatpush1.bf16.msra.mxu0 0
  %264 = vmatprep.subr.bf16.mxu0 0
  %265 = vmatpush1.bf16.msra.mxu0 %v214
  %266 = vmatprep.subr.bf16.mxu0 0
  %267 = vmatpush1.bf16.msra.mxu0 %v213
  %268 = vmatprep.subr.bf16.mxu0 0
  %269 = vmatpush1.bf16.msra.mxu0 %v212
  %270 = vmatprep.subr.bf16.mxu0 0
  %271 = vmatpush1.bf16.msra.mxu0 %v211
  %272 = vmatprep.subr.bf16.mxu0 0
  %273 = vmatpush2.bf16.msra.mxu0 0
  %274 = vmatprep.subr.bf16.mxu0 0
  %275 = vmatpush2.bf16.msra.mxu0 0
  %276 = vmatprep.subr.bf16.mxu0 0
  %277 = vmatpush2.bf16.msra.mxu0 0
  %278 = vmatprep.subr.bf16.mxu0 0
  %279 = vmatpush2.bf16.msra.mxu0 0
  %280 = vmatprep.subr.bf16.mxu0 0
  %281 = vmatpush2.bf16.msra.mxu0 0
  %282 = vmatprep.subr.bf16.mxu0 0
  %283 = vmatpush2.bf16.msra.mxu0 0
  %284 = vmatprep.subr.bf16.mxu0 0
  %285 = vmatpush2.bf16.msra.mxu0 0
  %286 = vmatprep.subr.bf16.mxu0 0
  %287 = vmatpush2.bf16.msra.mxu0 0
  %288 = vmatprep.mubr.bf16.mxu0 0
  %289 = vmatmul.mubr.bf16.gmra.mxu0 %v251
  %v290 = vpop.f32.mrf.mxu0
  %v291 = vadd.f32 %v222, %v290
  %v292 = vpop.f32.mrf.mxu0
  %v293 = vpop.f32.mrf.mxu0
  %v294 = vadd.f32 %v227, %v293
  %v295 = vpop.f32.mrf.mxu0
  %296 = vmatprep.mubr.bf16.mxu0 0
  %297 = vmatmul.mubr.bf16.gmra.mxu0 %v254
  %v298 = vpop.f32.mrf.mxu0
  %v299 = vadd.f32 %v232, %v298
  %v300 = vpop.f32.mrf.mxu0
  %v301 = vpop.f32.mrf.mxu0
  %v302 = vadd.f32 %v237, %v301
  %v303 = vpop.f32.mrf.mxu0
  %304 = vdwg.mxu0
  %v305 = vmax.f32 %v291, 0.0
  %v306 = vmax.f32 %v294, 0.0
  %v307 = vmax.f32 %v299, 0.0
  %v308 = vmax.f32 %v302, 0.0
  %v309 = vld [vmem:[%s5] sm:$0xff]
  %v310 = vld [vmem:[%s5 + $0x8] sm:$0xff]
  %v311 = vld [vmem:[%s5 + $0x10] sm:$0xff]
  %v312 = vld [vmem:[%s5 + $0x18] sm:$0xff]
  %314 = vset.pattern.permute.xlu0 0
  %315 = vperm.xlu0 %314, %v309
  %v316 = vpop.permute.xlu0 %315
  %319 = vset.pattern.permute.xlu0 0
  %320 = vperm.xlu0 %319, %v310
  %v321 = vpop.permute.xlu0 %320
  %324 = vset.pattern.permute.xlu0 0
  %325 = vperm.xlu0 %324, %v311
  %v326 = vpop.permute.xlu0 %325
  %329 = vset.pattern.permute.xlu0 0
  %330 = vperm.xlu0 %329, %v312
  %v331 = vpop.permute.xlu0 %330
  %v333 = vmul.f32 %v305, %v316
  %v334 = vmul.f32 %v306, %v321
  %v335 = vmul.f32 %v307, %v326
  %v336 = vmul.f32 %v308, %v331
  %v337 = vadd.f32 %v333, %v334
  %v338 = vadd.f32 %v337, %v335
  %v339 = vadd.f32 %v338, %v336
  %v340 = vrot.slane %v339, 4
  %v341 = vadd.f32 %v339, %v340
  %v342 = vrot.slane %v341, 2
  %v343 = vadd.f32 %v341, %v342
  %v344 = vrot.slane %v343, 1
  %v345 = vadd.f32 %v343, %v344
  %v346 = vld [vmem:[#allocation2] sm:$0x1]
  %348 = vset.pattern.permute.xlu0 0
  %349 = vperm.xlu0 %348, %v346
  %v350 = vpop.permute.xlu0 %349
  %v352 = vlaneseq
  %v353 = vshrl.u32 %v352, 7
  %v354 = vsub.s32 0, %v353
  %v355 = vrot.slane %v350, %v354
  %v356 = vadd.f32 %v345, %v355
  %357 = vst [vmem:[%s7] sm:$0x1] %v356
  // Predicated region
  $region30: #{mlp_forward.1} parent=0 // pred_check
    _
  $region31: #{mlp_forward.1} parent=0 // pred_check_branch
    %359 = sbr.rel (0) target = $region33
  $region32: #{mlp_forward.1} parent=0 // pred_region
    _
  $region33: #{mlp_forward.1} parent=0 // pred_fallthru
    _
  // Predicated region
  $region34: #{mlp_forward.1} parent=0 // pred_check
    _
  $region35: #{mlp_forward.1} parent=0 // pred_check_branch
    %361 = sbr.rel (0) target = $region37
  $region36: #{mlp_forward.1} parent=0 // pred_region
    _
  $region37: #{mlp_forward.1} parent=0 // pred_fallthru
    _

</llo_original>
